<compile_context>
chip_gen: v6e
topology: v6e:2x2x1
jax: 0.10.0
libtpu: 0.0.40
codegen_flags: <defaults>
</compile_context>

<pallas_src>
import jax
import jax.numpy as jnp
from jax.experimental import pallas as pl
from jax.experimental.pallas import tpu as pltpu


def _identity_copy_kernel(x_ref, o_ref):
    # Pure pass-through on the current tile.
    o_ref[...] = x_ref[...]


def identical_pool(x: jnp.ndarray, batch: jnp.ndarray | None = None,
                   batch_size: int | None = None) -> jnp.ndarray:
    """IdenticalPool.forward: the op is an identity, so just return x.

    `batch` / `batch_size` are accepted for API parity and ignored, exactly
    like the reference module.  This path generates no kernel and no HBM
    traffic (the preferred implementation on all TPU generations).
    """
    return x


def identical_pool_pallas(x: jnp.ndarray, batch: jnp.ndarray | None = None,
                          batch_size: int | None = None,
                          *, tile_rows: int = 1024) -> jnp.ndarray:
    """Identity pooling through an explicit Pallas kernel boundary.

    Used only when a kernel call is mandated by the surrounding framework.
    The copy is lane-dense, row-tiled, pipelined, and input/output aliased.
    """
    orig_shape = x.shape
    total = x.size

    # --- Lane-dense slab layout: last dim a multiple of 128 when possible ---
    if total % 1024 == 0:
        lanes = 1024
    elif total % 128 == 0:
        lanes = 128
    else:
        lanes = None

    if lanes is not None:
        slab = x.reshape(total // lanes, lanes)
    else:
        # Fallback: keep a 2-D view; full-extent block is always legal.
        slab = x if x.ndim == 2 else x.reshape(-1, x.shape[-1] if x.ndim > 1 else total)

    rows, cols = slab.shape

    # --- Row tiling: (8,128)-aligned blocks, bounded VMEM footprint ---
    if lanes is not None and rows > tile_rows:
        tm = tile_rows                 # multiple of 8 by construction (>= 8)
        grid = (pl.cdiv(rows, tm),)    # partial last block handled by Pallas
        block = (tm, cols)
    else:
        # Small arrays: single full-extent block (legal regardless of alignment).
        grid = (1,)
        block = (rows, cols)

    out = pl.pallas_call(
        _identity_copy_kernel,
        out_shape=jax.ShapeDtypeStruct((rows, cols), slab.dtype),
        grid=grid,
        in_specs=[pl.BlockSpec(block, lambda i: (i, 0))],
        out_specs=pl.BlockSpec(block, lambda i: (i, 0)),
        # Output aliases the input buffer: no new HBM allocation for the result.
        input_output_aliases={0: 0},
        compiler_params=pltpu.CompilerParams(
            # Row axis is independent -> shard across v7x's 2 TensorCores.
            dimension_semantics=("parallel",),
        ),
    )(slab)
    return out.reshape(orig_shape)


if __name__ == "__main__":
    key = jax.random.PRNGKey(0)
    k_x, k_b, k_x2 = jax.random.split(key, 3)

    # --- Small node-feature matrix, shapes implied by the GNN pooling module ---
    num_nodes, feat_dim = 8, 32
    batch_size = 2
    x = jax.random.normal(k_x, (num_nodes, feat_dim), dtype=jnp.float32)
    batch = jax.random.randint(k_b, (num_nodes,), 0, batch_size, dtype=jnp.int32)

    # Preferred zero-cost path.
    out_fast = identical_pool(x, batch, batch_size)
    out_fast = jax.block_until_ready(out_fast)
    assert out_fast.shape == x.shape and out_fast.dtype == x.dtype
    assert bool(jnp.all(out_fast == x))

    # Pallas kernel path (single full-extent lane-dense block: 256 elems -> (2, 128)).
    out_kernel = identical_pool_pallas(x, batch, batch_size)
    out_kernel = jax.block_until_ready(out_kernel)
    assert out_kernel.shape == x.shape and out_kernel.dtype == x.dtype
    assert bool(jnp.all(out_kernel == x))

    # Exercise the row-tiled, multi-block path on a slightly larger matrix:
    # (512, 64) f32 -> lane-dense slab (32, 1024), tile_rows=8 -> grid=(4,).
    x2 = jax.random.normal(k_x2, (512, 64), dtype=jnp.float32)
    out2 = identical_pool_pallas(x2, tile_rows=8)
    out2 = jax.block_until_ready(out2)
    assert out2.shape == x2.shape and out2.dtype == x2.dtype
    assert bool(jnp.all(out2 == x2))

    print("KERNEL_OK")
</pallas_src>

<mosaic_0001>
module attributes {stable_mosaic.version = 11 : i64} {
  func.func @_identity_copy_kernel(%arg0: i32, %arg1: memref<2x128xf32, #tpu.memory_space<vmem>>, %arg2: memref<2x128xf32, #tpu.memory_space<vmem>>) attributes {dimension_semantics = [#tpu.dimension_semantics<parallel>], iteration_bounds = array<i64: 1>, scalar_prefetch = 0 : i64, scratch_operands = 0 : i64, tpu.core_type = #tpu.core_type<tc>, window_params = [{transform_indices = @transform_0, window_bounds = array<i64: 2, 128>}, {transform_indices = @transform_1, window_bounds = array<i64: 2, 128>}]} {
    %c0 = arith.constant 0 : index
    %c0_0 = arith.constant 0 : index
    %0 = vector.load %arg1[%c0, %c0_0] : memref<2x128xf32, #tpu.memory_space<vmem>>, vector<2x128xf32>
    %c0_1 = arith.constant 0 : index
    %c0_2 = arith.constant 0 : index
    %1 = vector.load %arg2[%c0_1, %c0_2] : memref<2x128xf32, #tpu.memory_space<vmem>>, vector<2x128xf32>
    tpu.vector_store %arg2[%c0_1, %c0_2], %0 {strides = array<i32>} : memref<2x128xf32, #tpu.memory_space<vmem>>, vector<2x128xf32>,
    return
  }
  func.func @transform_0(%arg0: i32) -> (i32, i32) {
    %c0_i32 = arith.constant 0 : i32
    %c0_i32_0 = arith.constant 0 : i32
    return %arg0, %c0_i32 : i32, i32
  }
  func.func @transform_1(%arg0: i32) -> (i32, i32) {
    %c0_i32 = arith.constant 0 : i32
    %c0_i32_0 = arith.constant 0 : i32
    return %arg0, %c0_i32 : i32, i32
  }
}

</mosaic_0001>

<llo_original>
// kernel: tpu_custom_call.1
$region0: #{tpu_custom_call.1}
  #allocation0 [shape = 'u32[]', space=smem, size = 0x4, offset = 0x4, fixed_abs, tag = 'smem constant byte address 0x4 - core index']
  #allocation1 [shape = 'u32[144,128]{1,0:T(1,128)}', space=vmem, size = 0x12000, scoped, tag = 'internal scratch']
  %s0 = inlined_call_operand.hbm [shape: f32[2,128], index: 0, kind: input, shape index: {}, may-alias: {0,1}]
  %s1 = inlined_call_operand.hbm [shape: f32[2,128], index: 1, kind: output, shape index: {}, may-alias: {0,1}]
  %s2 = sld [smem:[#allocation0]]
  $region18: #{tpu_custom_call.1} parent=0
    _
  %s4 = ssub.s32 1, %s2
  %s5 = scalar_select 0, %s4, %s2
  $region1: #{tpu_custom_call.1} parent=0
    #allocation2 [shape = 'u8[1024]{0}', space=vmem, size = 0x400, scoped, tag = 'input window, operand 0, single buffered']
    #allocation3 [shape = 's32[1]{0}', space=sflag, size = 0x4, scoped, tag = 'scoped memory for tpu_custom_call.1']
    #allocation4 [shape = 's32[1]{0}', space=sflag, size = 0x4, scoped, tag = 'scoped memory for tpu_custom_call.1']
    #allocation5 [shape = 'u8[1024]{0}', space=vmem, size = 0x400, scoped, tag = 'output window, operand 0, single buffered']
    %6 = vsyncpa [#allocation3], 0
    %7 = vsyncpa [#allocation4], 0
    // Predicated region
    $region2: #{tpu_custom_call.1} parent=1 // pred_check
      _
    $region3: #{tpu_custom_call.1} parent=1 // pred_check_branch
      %9 = sbr.rel (0) target = $region5
    $region4: #{tpu_custom_call.1} parent=1 // pred_region
      %s11 = ssub.s32 32, 32
      %12 = vsyncadd [#allocation3], %s11
      %s14 = sshll.u32 [#allocation2], 4
      %s15 = int_to_ptr.vmem [resolvable:$true] %s14
      %17 = dma.hbm_to_vmem [thread:$0]  %s0, 32, %s15, [#allocation3]
    $region5: #{tpu_custom_call.1} parent=1 // pred_fallthru
      _
    // Predicated region
    $region6: #{tpu_custom_call.1} parent=1 // pred_check
      _
    $region7: #{tpu_custom_call.1} parent=1 // pred_check_branch
      %19 = sbr.rel (0) target = $region9
    $region8: #{tpu_custom_call.1} parent=1 // pred_region
      %20 = dma.done [#allocation3], 32
    $region9: #{tpu_custom_call.1} parent=1 // pred_fallthru
      _
    %v21 = vld [vmem:[#allocation2] sm:$0x3]
    %22 = vst [vmem:[#allocation5] sm:$0x3] %v21
    // Predicated region
    $region10: #{tpu_custom_call.1} parent=1 // pred_check
      _
    $region11: #{tpu_custom_call.1} parent=1 // pred_check_branch
      %24 = sbr.rel (0) target = $region13
    $region12: #{tpu_custom_call.1} parent=1 // pred_region
      %s26 = ssub.s32 32, 32
      %27 = vsyncadd [#allocation4], %s26
      %s29 = sshll.u32 [#allocation5], 4
      %s30 = int_to_ptr.vmem [resolvable:$true] %s29
      %32 = dma.vmem_to_hbm [thread:$0]  %s30, 32, %s1, [#allocation4]
    $region13: #{tpu_custom_call.1} parent=1 // pred_fallthru
      _
    // Predicated region
    $region14: #{tpu_custom_call.1} parent=1 // pred_check
      _
    $region15: #{tpu_custom_call.1} parent=1 // pred_check_branch
      %34 = sbr.rel (0) target = $region17
    $region16: #{tpu_custom_call.1} parent=1 // pred_region
      %35 = dma.done [#allocation4], 32
    $region17: #{tpu_custom_call.1} parent=1 // pred_fallthru
      _
    %36 = vsyncpa [#allocation3], 1
    %37 = vsyncpa [#allocation4], 1

</llo_original>
